<compile_context>
chip_gen: v7x
topology: tpu7x:2x2x1
jax: 0.10.0
libtpu: 0.0.40
codegen_flags: <defaults>
</compile_context>

<pallas_src>
import functools

import jax
import jax.numpy as jnp
from jax import lax
from jax.experimental import pallas as pl
from jax.experimental.pallas import tpu as pltpu


def _round_up(a, b):
    return (a + b - 1) // b * b


def _cdiv(a, b):
    return -(-a // b)


def _usefulness_kernel(x_ref, y_ref, w_ref, out_ref, acc_ref, *,
                       n_total, tile_n, tiles_per_core, d_pad, need_mask):
    """One batch tile on one (virtual) core.

    x_ref  : (tn, D_in)     streamed inputs (native dtype)
    y_ref  : (tn, Dp)       streamed zero-padded targets
    w_ref  : (2*Dp, D_in)   resident stacked [W_s ; W_s - W_t]
    out_ref: (8, 128) f32   per-core partial sum (lane-dense block)
    acc_ref: (tn, Dp) f32   elementwise accumulator (no per-tile XLU reduce)
    """
    c = pl.program_id(0)
    i = pl.program_id(1)

    @pl.when(i == 0)
    def _init():
        acc_ref[...] = jnp.zeros_like(acc_ref)

    # Single fused MXU matmul: [pred | dproj] = x @ [W_s ; W_s - W_t]^T, f32 acc.
    dims = (((1,), (1,)), ((), ()))
    both = lax.dot_general(x_ref[...], w_ref[...], dims,
                           preferred_element_type=jnp.float32)     # (tn, 2*Dp)
    pred = both[:, :d_pad]
    dproj = both[:, d_pad:]
    # Padded columns of pred/target/dproj are exactly zero -> contribute nothing.
    contrib = (pred - y_ref[...].astype(jnp.float32)) * dproj      # (tn, Dp)

    if need_mask:
        tile = c * tiles_per_core + i
        interior = (tile + 1) * tile_n <= n_total  # mask only edge / phantom tiles

        @pl.when(interior)
        def _interior():
            acc_ref[...] += contrib

        @pl.when(jnp.logical_not(interior))
        def _edge():
            rows = tile * tile_n + lax.broadcasted_iota(jnp.int32, (tile_n, 1), 0)
            acc_ref[...] += jnp.where(rows < n_total, contrib, 0.0)
    else:
        acc_ref[...] += contrib

    @pl.when(i == pl.num_programs(1) - 1)
    def _finalize():
        out_ref[...] = jnp.zeros_like(out_ref) + jnp.sum(acc_ref[...])


def example_usefulness_forward(x, target, w_student, w_teacher, lr, *, tile_n=None):
    """Returns lr * 2 * <W_s - W_teacher, dMSE/dW_s(W_s; x, target)> as an f32 scalar."""
    N, D_in = x.shape
    D_out = target.shape[1]
    assert w_student.shape == (D_out, D_in)
    assert w_teacher.shape == (D_out, D_in)

    cdtype = x.dtype
    itemsize = jnp.dtype(cdtype).itemsize
    pack = max(8, 32 // itemsize)          # sublane packing: 8 f32 / 16 bf16
    Dp = _round_up(D_out, 128)             # lane-aligned half width; 2*Dp is MXU friendly

    # Host-side stacked weight operand: rows [0:D_out]=W_s, rows [Dp:Dp+D_out]=W_s-W_t.
    ws32 = w_student.astype(jnp.float32)
    dw32 = ws32 - w_teacher.astype(jnp.float32)   # subtract in f32, then cast once
    w_stack = jnp.zeros((2 * Dp, D_in), dtype=cdtype)
    w_stack = w_stack.at[:D_out].set(ws32.astype(cdtype))
    w_stack = w_stack.at[Dp:Dp + D_out].set(dw32.astype(cdtype))

    # Zero-pad target columns to Dp (padded pred columns are exactly 0 as well).
    y = target if Dp == D_out else jnp.pad(target, ((0, 0), (0, Dp - D_out)))

    # ---- generation-aware VMEM budget & batch tile size ---------------------
    try:
        vmem_cap = int(pltpu.get_tpu_info().vmem_capacity_bytes)
    except Exception:
        vmem_cap = 64 << 20                # conservative fallback (fits all gens)
    vmem_ceiling = min(vmem_cap - (8 << 20), 100 << 20)

    w_bytes = 2 * Dp * D_in * itemsize                       # resident (single-buffered)
    fixed = w_bytes + 8 * 128 * 4 + (1 << 20)                # + out block + slack
    per_row = 2 * (D_in + Dp) * itemsize + 4 * Dp            # 2x streamed tiles + f32 acc
    tn_fit = max(pack, (vmem_ceiling - fixed) // per_row)

    if tile_n is None:
        tile_n = 2048                                        # amortize ~0.35us/step overhead
    tn = min(int(tile_n), int(tn_fit), _round_up(N, pack))
    tn = max(pack, (tn // pack) * pack)

    n_tiles = _cdiv(N, tn)
    n_cores = 2 if n_tiles >= 2 else 1        # megacore split (v7x); harmless on 1-TC chips
    tiles_per_core = _cdiv(n_tiles, n_cores)
    need_mask = (n_cores * tiles_per_core * tn) != N

    vmem_limit = int(max(16 << 20,
                         min(vmem_ceiling, fixed + w_bytes + tn * per_row + (2 << 20))))

    def stream_idx(c, i):
        # Clamp phantom trailing tiles onto the last real tile (their rows are masked).
        return (jnp.minimum(c * tiles_per_core + i, n_tiles - 1), 0)

    kernel = functools.partial(
        _usefulness_kernel,
        n_total=N, tile_n=tn, tiles_per_core=tiles_per_core,
        d_pad=Dp, need_mask=need_mask)

    def build(single_buffer_weights):
        if single_buffer_weights:
            try:
                w_spec = pl.BlockSpec((2 * Dp, D_in), lambda c, i: (0, 0),
                                      pipeline_mode=pl.Buffered(1))
            except Exception:
                w_spec = pl.BlockSpec((2 * Dp, D_in), lambda c, i: (0, 0))
        else:
            w_spec = pl.BlockSpec((2 * Dp, D_in), lambda c, i: (0, 0))
        return pl.pallas_call(
            kernel,
            out_shape=jax.ShapeDtypeStruct((n_cores * 8, 128), jnp.float32),
            grid_spec=pltpu.PrefetchScalarGridSpec(
                num_scalar_prefetch=0,
                grid=(n_cores, tiles_per_core),
                in_specs=[
                    pl.BlockSpec((tn, D_in), stream_idx),    # streamed x
                    pl.BlockSpec((tn, Dp), stream_idx),      # streamed padded target
                    w_spec,                                  # resident stacked weights
                ],
                out_specs=pl.BlockSpec((8, 128), lambda c, i: (c, 0)),
                scratch_shapes=[pltpu.VMEM((tn, Dp), jnp.float32)],
            ),
            compiler_params=pltpu.CompilerParams(
                dimension_semantics=("parallel", "arbitrary"),
                vmem_limit_bytes=vmem_limit,
            ),
        )

    try:
        raw = build(True)(x, y, w_stack)
    except Exception:
        # Fallback for environments where single-buffered pipeline_mode is unsupported.
        raw = build(False)(x, y, w_stack)

    per_core = raw.reshape(n_cores, 8, 128)[:, 0, 0]
    # Fold all static scales (2/(N*D_out) from MSE grad, lr*2 from forward) into one
    # scalar multiply outside the kernel; lr may be traced (no recompiles).
    return (4.0 / (N * D_out)) * lr * jnp.sum(per_core)


def _reference(x, target, w_student, w_teacher, lr):
    hp = jax.lax.Precision.HIGHEST
    pred = jnp.dot(x, w_student.T, precision=hp)
    resid = pred - target
    grad = (2.0 / resid.size) * jnp.dot(resid.T, x, precision=hp)
    return lr * 2.0 * jnp.sum((w_student - w_teacher) * grad)


if __name__ == "__main__":
    key = jax.random.PRNGKey(0)
    k_x, k_y, k_ws, k_wt = jax.random.split(key, 4)

    batch, d_in, d_out = 8, 32, 8
    lr = 0.01

    x = jax.random.normal(k_x, (batch, d_in), dtype=jnp.float32)
    target = jax.random.normal(k_y, (batch, d_out), dtype=jnp.float32)
    # Deterministic "parameter init" for student & teacher linear weights.
    w_student = 0.1 * jax.random.normal(k_ws, (d_out, d_in), dtype=jnp.float32)
    w_teacher = 0.1 * jax.random.normal(k_wt, (d_out, d_in), dtype=jnp.float32)

    # 1) Small single-tile f32 path.
    out = jax.block_until_ready(
        example_usefulness_forward(x, target, w_student, w_teacher, lr))
    ref = _reference(x, target, w_student, w_teacher, lr)
    assert jnp.allclose(out, ref, rtol=5e-3, atol=1e-6), (out, ref)

    # 2) Multi-tile + partial last tile + core-split path (f32, N not multiple of tn).
    n2 = 300
    x2 = jax.random.normal(k_x, (n2, d_in), dtype=jnp.float32)
    t2 = jax.random.normal(k_y, (n2, d_out), dtype=jnp.float32)
    out2 = jax.block_until_ready(
        example_usefulness_forward(x2, t2, w_student, w_teacher, lr, tile_n=64))
    ref2 = _reference(x2, t2, w_student, w_teacher, lr)
    assert jnp.allclose(out2, ref2, rtol=5e-3, atol=1e-6), (out2, ref2)

    # 3) bf16 operand path (f32 MXU accumulation inside the kernel).
    xb = x2.astype(jnp.bfloat16)
    tb = t2.astype(jnp.bfloat16)
    wsb = w_student.astype(jnp.bfloat16)
    wtb = w_teacher.astype(jnp.bfloat16)
    out3 = jax.block_until_ready(
        example_usefulness_forward(xb, tb, wsb, wtb, lr, tile_n=64))
    ref3 = _reference(xb.astype(jnp.float32), tb.astype(jnp.float32),
                      wsb.astype(jnp.float32), wtb.astype(jnp.float32), lr)
    assert jnp.allclose(out3, ref3, rtol=3e-2, atol=5e-5), (out3, ref3)

    print("KERNEL_OK")
</pallas_src>

<mosaic_0001>
module attributes {stable_mosaic.version = 11 : i64} {
  func.func @_usefulness_kernel(%arg0: i32, %arg1: i32, %arg2: memref<8x32xf32, #tpu.memory_space<vmem>>, %arg3: memref<8x128xf32, #tpu.memory_space<vmem>>, %arg4: memref<256x32xf32, #tpu.memory_space<vmem>>, %arg5: memref<8x128xf32, #tpu.memory_space<vmem>>, %arg6: memref<8x128xf32, #tpu.memory_space<vmem>>) attributes {dimension_semantics = [#tpu.dimension_semantics<parallel>, #tpu.dimension_semantics<arbitrary>], iteration_bounds = array<i64: 1, 1>, scalar_prefetch = 0 : i64, scratch_operands = 1 : i64, tpu.core_type = #tpu.core_type<tc>, window_params = [{transform_indices = @transform_0, window_bounds = array<i64: 8, 32>}, {transform_indices = @transform_1, window_bounds = array<i64: 8, 128>}, {pipeline_mode = #tpu.pipeline_mode<synchronous>, transform_indices = @transform_2, window_bounds = array<i64: 256, 32>}, {transform_indices = @transform_3, window_bounds = array<i64: 8, 128>}]} {
    %c0_i32 = arith.constant 0 : i32
    %0 = arith.cmpi eq, %arg1, %c0_i32 : i32
    %1 = arith.extui %0 : i1 to i32
    %c0_i32_0 = arith.constant 0 : i32
    %2 = arith.cmpi ne, %1, %c0_i32_0 : i32
    scf.if %2 {
      %cst_12 = arith.constant 0.000000e+00 : f32
      %17 = vector.broadcast %cst_12 : f32 to vector<8x128xf32>
      %c0_13 = arith.constant 0 : index
      %c0_14 = arith.constant 0 : index
      %18 = vector.load %arg6[%c0_13, %c0_14] : memref<8x128xf32, #tpu.memory_space<vmem>>, vector<8x128xf32>
      tpu.vector_store %arg6[%c0_13, %c0_14], %17 {strides = array<i32>} : memref<8x128xf32, #tpu.memory_space<vmem>>, vector<8x128xf32>,
    } else {
    }
    %c0 = arith.constant 0 : index
    %c0_1 = arith.constant 0 : index
    %3 = vector.load %arg2[%c0, %c0_1] : memref<8x32xf32, #tpu.memory_space<vmem>>, vector<8x32xf32>
    %c0_2 = arith.constant 0 : index
    %c0_3 = arith.constant 0 : index
    %4 = vector.load %arg4[%c0_2, %c0_3] : memref<256x32xf32, #tpu.memory_space<vmem>>, vector<256x32xf32>
    %cst = arith.constant dense<0.000000e+00> : vector<8x256xf32>
    %5 = tpu.matmul %3, %4, %cst {dimension_numbers = #tpu.dot_dimension_numbers<[1], [1], [0], [0], [0, 0, 1, 0], [], []>} : vector<8x32xf32>, vector<256x32xf32>, vector<8x256xf32> -> vector<8x256xf32>
    %6 = vector.extract_strided_slice %5 {offsets = [0, 0], sizes = [8, 128], strides = [1, 1]} : vector<8x256xf32> to vector<8x128xf32>
    %7 = vector.extract_strided_slice %5 {offsets = [0, 128], sizes = [8, 128], strides = [1, 1]} : vector<8x256xf32> to vector<8x128xf32>
    %c0_4 = arith.constant 0 : index
    %c0_5 = arith.constant 0 : index
    %8 = vector.load %arg3[%c0_4, %c0_5] : memref<8x128xf32, #tpu.memory_space<vmem>>, vector<8x128xf32>
    %9 = arith.subf %6, %8 : vector<8x128xf32>
    %10 = arith.mulf %9, %7 : vector<8x128xf32>
    %c0_6 = arith.constant 0 : index
    %c0_7 = arith.constant 0 : index
    %11 = vector.load %arg6[%c0_6, %c0_7] : memref<8x128xf32, #tpu.memory_space<vmem>>, vector<8x128xf32>
    %12 = arith.addf %11, %10 : vector<8x128xf32>
    %c0_8 = arith.constant 0 : index
    %c0_9 = arith.constant 0 : index
    %13 = vector.load %arg6[%c0_8, %c0_9] : memref<8x128xf32, #tpu.memory_space<vmem>>, vector<8x128xf32>
    tpu.vector_store %arg6[%c0_8, %c0_9], %12 {strides = array<i32>} : memref<8x128xf32, #tpu.memory_space<vmem>>, vector<8x128xf32>,
    %c0_i32_10 = arith.constant 0 : i32
    %14 = arith.cmpi eq, %arg1, %c0_i32_10 : i32
    %15 = arith.extui %14 : i1 to i32
    %c0_i32_11 = arith.constant 0 : i32
    %16 = arith.cmpi ne, %15, %c0_i32_11 : i32
    scf.if %16 {
      %cst_12 = arith.constant 0.000000e+00 : f32
      %17 = vector.broadcast %cst_12 : f32 to vector<8x128xf32>
      %c0_13 = arith.constant 0 : index
      %c0_14 = arith.constant 0 : index
      %18 = vector.load %arg6[%c0_13, %c0_14] : memref<8x128xf32, #tpu.memory_space<vmem>>, vector<8x128xf32>
      %19 = vector.shape_cast %18 : vector<8x128xf32> to vector<1x8x128xf32>
      %cst_15 = arith.constant dense<0.000000e+00> : vector<1xf32>
      %20 = vector.multi_reduction <add>, %19, %cst_15 [1, 2] : vector<1x8x128xf32> to vector<1xf32>
      %21 = vector.shape_cast %20 : vector<1xf32> to vector<1x1x1xf32>
      %22 = vector.extract %21[0, 0, 0] : f32 from vector<1x1x1xf32>
      %23 = vector.broadcast %22 : f32 to vector<8x128xf32>
      %24 = arith.addf %17, %23 : vector<8x128xf32>
      %c0_16 = arith.constant 0 : index
      %c0_17 = arith.constant 0 : index
      %25 = vector.load %arg5[%c0_16, %c0_17] : memref<8x128xf32, #tpu.memory_space<vmem>>, vector<8x128xf32>
      tpu.vector_store %arg5[%c0_16, %c0_17], %24 {strides = array<i32>} : memref<8x128xf32, #tpu.memory_space<vmem>>, vector<8x128xf32>,
    } else {
    }
    return
  }
  func.func @transform_0(%arg0: i32, %arg1: i32) -> (i32, i32) {
    %c1_i32 = arith.constant 1 : i32
    %0 = arith.muli %arg0, %c1_i32 : i32
    %1 = arith.addi %0, %arg1 : i32
    %c0_i32 = arith.constant 0 : i32
    %2 = arith.minsi %1, %c0_i32 : i32
    %c0_i32_0 = arith.constant 0 : i32
    %c0_i32_1 = arith.constant 0 : i32
    return %2, %c0_i32_0 : i32, i32
  }
  func.func @transform_1(%arg0: i32, %arg1: i32) -> (i32, i32) {
    %c1_i32 = arith.constant 1 : i32
    %0 = arith.muli %arg0, %c1_i32 : i32
    %1 = arith.addi %0, %arg1 : i32
    %c0_i32 = arith.constant 0 : i32
    %2 = arith.minsi %1, %c0_i32 : i32
    %c0_i32_0 = arith.constant 0 : i32
    %c0_i32_1 = arith.constant 0 : i32
    return %2, %c0_i32_0 : i32, i32
  }
  func.func @transform_2(%arg0: i32, %arg1: i32) -> (i32, i32) {
    %c0_i32 = arith.constant 0 : i32
    %c0_i32_0 = arith.constant 0 : i32
    %c0_i32_1 = arith.constant 0 : i32
    return %c0_i32, %c0_i32_0 : i32, i32
  }
  func.func @transform_3(%arg0: i32, %arg1: i32) -> (i32, i32) {
    %c0_i32 = arith.constant 0 : i32
    %c0_i32_0 = arith.constant 0 : i32
    return %arg0, %c0_i32 : i32, i32
  }
}

module attributes {stable_mosaic.version = 11 : i64} {
  func.func @_usefulness_kernel(%arg0: i32, %arg1: i32, %arg2: memref<8x32xf32, #tpu.memory_space<vmem>>, %arg3: memref<8x128xf32, #tpu.memory_space<vmem>>, %arg4: memref<256x32xf32, #tpu.memory_space<vmem>>, %arg5: memref<8x128xf32, #tpu.memory_space<vmem>>, %arg6: memref<8x128xf32, #tpu.memory_space<vmem>>) attributes {dimension_semantics = [#tpu.dimension_semantics<parallel>, #tpu.dimension_semantics<arbitrary>], iteration_bounds = array<i64: 1, 1>, scalar_prefetch = 0 : i64, scratch_operands = 1 : i64, tpu.core_type = #tpu.core_type<tc>, window_params = [{transform_indices = @transform_0, window_bounds = array<i64: 8, 32>}, {transform_indices = @transform_1, window_bounds = array<i64: 8, 128>}, {pipeline_mode = #tpu.pipeline_mode<synchronous>, transform_indices = @transform_2, window_bounds = array<i64: 256, 32>}, {transform_indices = @transform_3, window_bounds = array<i64: 8, 128>}]} {
    %c0_i32 = arith.constant 0 : i32
    %0 = arith.cmpi eq, %arg1, %c0_i32 : i32
    %1 = arith.extui %0 : i1 to i32
    %c0_i32_0 = arith.constant 0 : i32
    %2 = arith.cmpi ne, %1, %c0_i32_0 : i32
    scf.if %2 {
      %cst_12 = arith.constant 0.000000e+00 : f32
      %17 = vector.broadcast %cst_12 : f32 to vector<8x128xf32>
      %c0_13 = arith.constant 0 : index
      %c0_14 = arith.constant 0 : index
      %18 = vector.load %arg6[%c0_13, %c0_14] : memref<8x128xf32, #tpu.memory_space<vmem>>, vector<8x128xf32>
      tpu.vector_store %arg6[%c0_13, %c0_14], %17 {strides = array<i32>} : memref<8x128xf32, #tpu.memory_space<vmem>>, vector<8x128xf32>,
    } else {
    }
    %c0 = arith.constant 0 : index
    %c0_1 = arith.constant 0 : index
    %3 = vector.load %arg2[%c0, %c0_1] : memref<8x32xf32, #tpu.memory_space<vmem>>, vector<8x32xf32>
    %c0_2 = arith.constant 0 : index
    %c0_3 = arith.constant 0 : index
    %4 = vector.load %arg4[%c0_2, %c0_3] : memref<256x32xf32, #tpu.memory_space<vmem>>, vector<256x32xf32>
    %cst = arith.constant dense<0.000000e+00> : vector<8x256xf32>
    %5 = tpu.matmul %3, %4, %cst {dimension_numbers = #tpu.dot_dimension_numbers<[1], [1], [0], [0], [0, 0, 1, 0], [], []>} : vector<8x32xf32>, vector<256x32xf32>, vector<8x256xf32> -> vector<8x256xf32>
    %6 = vector.extract_strided_slice %5 {offsets = [0, 0], sizes = [8, 128], strides = [1, 1]} : vector<8x256xf32> to vector<8x128xf32>
    %7 = vector.extract_strided_slice %5 {offsets = [0, 128], sizes = [8, 128], strides = [1, 1]} : vector<8x256xf32> to vector<8x128xf32>
    %c0_4 = arith.constant 0 : index
    %c0_5 = arith.constant 0 : index
    %8 = vector.load %arg3[%c0_4, %c0_5] : memref<8x128xf32, #tpu.memory_space<vmem>>, vector<8x128xf32>
    %9 = arith.subf %6, %8 : vector<8x128xf32>
    %10 = arith.mulf %9, %7 : vector<8x128xf32>
    %c0_6 = arith.constant 0 : index
    %c0_7 = arith.constant 0 : index
    %11 = vector.load %arg6[%c0_6, %c0_7] : memref<8x128xf32, #tpu.memory_space<vmem>>, vector<8x128xf32>
    %12 = arith.addf %11, %10 : vector<8x128xf32>
    %c0_8 = arith.constant 0 : index
    %c0_9 = arith.constant 0 : index
    %13 = vector.load %arg6[%c0_8, %c0_9] : memref<8x128xf32, #tpu.memory_space<vmem>>, vector<8x128xf32>
    tpu.vector_store %arg6[%c0_8, %c0_9], %12 {strides = array<i32>} : memref<8x128xf32, #tpu.memory_space<vmem>>, vector<8x128xf32>,
    %c0_i32_10 = arith.constant 0 : i32
    %14 = arith.cmpi eq, %arg1, %c0_i32_10 : i32
    %15 = arith.extui %14 : i1 to i32
    %c0_i32_11 = arith.constant 0 : i32
    %16 = arith.cmpi ne, %15, %c0_i32_11 : i32
    scf.if %16 {
      %cst_12 = arith.constant 0.000000e+00 : f32
      %17 = vector.broadcast %cst_12 : f32 to vector<8x128xf32>
      %c0_13 = arith.constant 0 : index
      %c0_14 = arith.constant 0 : index
      %18 = vector.load %arg6[%c0_13, %c0_14] : memref<8x128xf32, #tpu.memory_space<vmem>>, vector<8x128xf32>
      %19 = vector.shape_cast %18 : vector<8x128xf32> to vector<1x8x128xf32>
      %cst_15 = arith.constant dense<0.000000e+00> : vector<1xf32>
      %20 = vector.multi_reduction <add>, %19, %cst_15 [1, 2] : vector<1x8x128xf32> to vector<1xf32>
      %21 = vector.shape_cast %20 : vector<1xf32> to vector<1x1x1xf32>
      %22 = vector.extract %21[0, 0, 0] : f32 from vector<1x1x1xf32>
      %23 = vector.broadcast %22 : f32 to vector<8x128xf32>
      %24 = arith.addf %17, %23 : vector<8x128xf32>
      %c0_16 = arith.constant 0 : index
      %c0_17 = arith.constant 0 : index
      %25 = vector.load %arg5[%c0_16, %c0_17] : memref<8x128xf32, #tpu.memory_space<vmem>>, vector<8x128xf32>
      tpu.vector_store %arg5[%c0_16, %c0_17], %24 {strides = array<i32>} : memref<8x128xf32, #tpu.memory_space<vmem>>, vector<8x128xf32>,
    } else {
    }
    return
  }
  func.func @transform_0(%arg0: i32, %arg1: i32) -> (i32, i32) {
    %c1_i32 = arith.constant 1 : i32
    %0 = arith.muli %arg0, %c1_i32 : i32
    %1 = arith.addi %0, %arg1 : i32
    %c0_i32 = arith.constant 0 : i32
    %2 = arith.minsi %1, %c0_i32 : i32
    %c0_i32_0 = arith.constant 0 : i32
    %c0_i32_1 = arith.constant 0 : i32
    return %2, %c0_i32_0 : i32, i32
  }
  func.func @transform_1(%arg0: i32, %arg1: i32) -> (i32, i32) {
    %c1_i32 = arith.constant 1 : i32
    %0 = arith.muli %arg0, %c1_i32 : i32
    %1 = arith.addi %0, %arg1 : i32
    %c0_i32 = arith.constant 0 : i32
    %2 = arith.minsi %1, %c0_i32 : i32
    %c0_i32_0 = arith.constant 0 : i32
    %c0_i32_1 = arith.constant 0 : i32
    return %2, %c0_i32_0 : i32, i32
  }
  func.func @transform_2(%arg0: i32, %arg1: i32) -> (i32, i32) {
    %c0_i32 = arith.constant 0 : i32
    %c0_i32_0 = arith.constant 0 : i32
    %c0_i32_1 = arith.constant 0 : i32
    return %c0_i32, %c0_i32_0 : i32, i32
  }
  func.func @transform_3(%arg0: i32, %arg1: i32) -> (i32, i32) {
    %c0_i32 = arith.constant 0 : i32
    %c0_i32_0 = arith.constant 0 : i32
    return %arg0, %c0_i32 : i32, i32
  }
}

</mosaic_0001>

<llo_original>
// kernel: tpu_custom_call.1
$region0: #{tpu_custom_call.1}
  #allocation0 [shape = 'u32[]', space=smem, size = 0x4, offset = 0x4, fixed_abs, tag = 'smem constant byte address 0x4 - core index']
  #allocation1 [shape = 'u32[144,128]{1,0:T(1,128)}', space=vmem, size = 0x12000, scoped, tag = 'internal scratch']
  #allocation2 [shape = 'f32[8,128]{1,0:T(8,128)}', space=vmem, size = 0x1000, scoped, tag = 'scratch operand']
  %s0 = inlined_call_operand.vmem [shape: f32[8,32], index: 0, kind: input, shape index: {}]
  %s1 = inlined_call_operand.vmem [shape: f32[8,128], index: 1, kind: input, shape index: {}]
  %s2 = inlined_call_operand.vmem [shape: f32[256,32], index: 2, kind: input, shape index: {}]
  %s3 = inlined_call_operand.hbm [shape: f32[8,128], index: 3, kind: output, shape index: {}]
  %s4 = sld [smem:[#allocation0]]
  $region30: #{tpu_custom_call.1} parent=0
    _
  %s6 = ssub.s32 1, %s4
  %s7 = scalar_select 0, %s6, %s4
  $region1: #{tpu_custom_call.1} parent=0
    #allocation3 [shape = 'u8[4096]{0}', space=vmem, size = 0x1000, scoped, tag = 'output window, operand 0, single buffered']
    #allocation4 [shape = 's32[1]{0}', space=sflag, size = 0x4, scoped, tag = 'scoped memory for tpu_custom_call.1']
    %8 = vsyncpa [#allocation4], 0
    // Predicated region
    $region2: #{tpu_custom_call.1} parent=1 // pred_check
      _
    $region3: #{tpu_custom_call.1} parent=1 // pred_check_branch
      %10 = sbr.rel (0) target = $region5
    $region4: #{tpu_custom_call.1} parent=1 // pred_region
      %s11 = sadd.s32 0, 0
      %p12 = scmp.lt.s32.totalorder %s11, 0
      %s13 = scalar_select %p12, %s11, 0
      %p14 = scmp.lt.s32.totalorder %s13, 0
      %s15 = scalar_select %p14, %s13, 0
      %s16 = smul.addr %s15, 8
      %s17 = scalar_lea.vmem %s0, %s16
      %s18 = sadd.s32 0, 0
      %p19 = scmp.lt.s32.totalorder %s18, 0
      %s20 = scalar_select %p19, %s18, 0
    $region5: #{tpu_custom_call.1} parent=1 // pred_fallthru
      _
    // Predicated region
    $region6: #{tpu_custom_call.1} parent=1 // pred_check
      _
    $region7: #{tpu_custom_call.1} parent=1 // pred_check_branch
      %22 = sbr.rel (0) target = $region9
    $region8: #{tpu_custom_call.1} parent=1 // pred_region
      %s23 = sadd.s32 0, 0
      %p24 = scmp.lt.s32.totalorder %s23, 0
      %s25 = scalar_select %p24, %s23, 0
      %p26 = scmp.lt.s32.totalorder %s25, 0
      %s27 = scalar_select %p26, %s25, 0
      %s28 = smul.addr %s27, 8
      %s29 = scalar_lea.vmem %s1, %s28
      %s30 = sadd.s32 0, 0
      %p31 = scmp.lt.s32.totalorder %s30, 0
      %s32 = scalar_select %p31, %s30, 0
    $region9: #{tpu_custom_call.1} parent=1 // pred_fallthru
      _
    // Predicated region
    $region10: #{tpu_custom_call.1} parent=1 // pred_check
      _
    $region11: #{tpu_custom_call.1} parent=1 // pred_check_branch
      %34 = sbr.rel (0) target = $region13
    $region12: #{tpu_custom_call.1} parent=1 // pred_region
      _
    $region13: #{tpu_custom_call.1} parent=1 // pred_fallthru
      _
    %s35 = sadd.s32 0, 0
    %p36 = scmp.lt.s32.totalorder %s35, 0
    %s37 = scalar_select %p36, %s35, 0
    %p38 = scmp.lt.s32.totalorder %s37, 0
    %s39 = scalar_select %p38, %s37, 0
    %s40 = smul.addr %s39, 8
    %s41 = scalar_lea.vmem %s0, %s40
    %s42 = sadd.s32 0, 0
    %p43 = scmp.lt.s32.totalorder %s42, 0
    %s44 = scalar_select %p43, %s42, 0
    %p45 = scmp.lt.s32.totalorder %s44, 0
    %s46 = scalar_select %p45, %s44, 0
    %s47 = smul.addr %s46, 8
    %s48 = scalar_lea.vmem %s1, %s47
    %s49 = sadd.s32 0, 0
    %p50 = scmp.lt.s32.totalorder %s49, 0
    %s51 = scalar_select %p50, %s49, 0
    %p52 = scmp.lt.s32.totalorder %s51, 0
    %s53 = scalar_select %p52, %s51, 0
    %s54 = smul.addr %s53, 8
    %s55 = scalar_lea.vmem %s0, %s54
    %s56 = sadd.s32 0, 0
    %p57 = scmp.lt.s32.totalorder %s56, 0
    %s58 = scalar_select %p57, %s56, 0
    %s59 = sadd.s32 0, 0
    %p60 = scmp.lt.s32.totalorder %s59, 0
    %s61 = scalar_select %p60, %s59, 0
    %p62 = scmp.lt.s32.totalorder %s61, 0
    %s63 = scalar_select %p62, %s61, 0
    %s64 = smul.addr %s63, 8
    %s65 = scalar_lea.vmem %s1, %s64
    %s66 = sadd.s32 0, 0
    %p67 = scmp.lt.s32.totalorder %s66, 0
    %s68 = scalar_select %p67, %s66, 0
    %p69 = scmp.eq.s32.totalorder 0, 0
    // Predicated region
    $region14: #{tpu_custom_call.1} parent=1 // pred_check
      %p70 = pneg %p69
    $region15: #{tpu_custom_call.1} parent=1 // pred_check_branch
      %72 = sbr.rel (%p70) target = $region17
    $region16: #{tpu_custom_call.1} parent=1 // pred_region
      %73 = vst [vmem:[#allocation2] sm:$0xff] 0.0
    $region17: #{tpu_custom_call.1} parent=1 // pred_fallthru
      _
    %v74 = vld [vmem:[%s55] sm:$0xff]
    %v75 = vld [vmem:[%s2] sm:$0xff]
    %v76 = vld [vmem:[%s2 + $0x8] sm:$0xff]
    %v77 = vld [vmem:[%s2 + $0x10] sm:$0xff]
    %v78 = vld [vmem:[%s2 + $0x18] sm:$0xff]
    %v79 = vld [vmem:[%s2 + $0x20] sm:$0xff]
    %v80 = vld [vmem:[%s2 + $0x28] sm:$0xff]
    %v81 = vld [vmem:[%s2 + $0x30] sm:$0xff]
    %v82 = vld [vmem:[%s2 + $0x38] sm:$0xff]
    %v83 = vld [vmem:[%s2 + $0x40] sm:$0xff]
    %v84 = vld [vmem:[%s2 + $0x48] sm:$0xff]
    %v85 = vld [vmem:[%s2 + $0x50] sm:$0xff]
    %v86 = vld [vmem:[%s2 + $0x58] sm:$0xff]
    %v87 = vld [vmem:[%s2 + $0x60] sm:$0xff]
    %v88 = vld [vmem:[%s2 + $0x68] sm:$0xff]
    %v89 = vld [vmem:[%s2 + $0x70] sm:$0xff]
    %v90 = vld [vmem:[%s2 + $0x78] sm:$0xff]
    %v91 = vld [vmem:[%s2 + $0x80] sm:$0xff]
    %v92 = vld [vmem:[%s2 + $0x88] sm:$0xff]
    %v93 = vld [vmem:[%s2 + $0x90] sm:$0xff]
    %v94 = vld [vmem:[%s2 + $0x98] sm:$0xff]
    %v95 = vld [vmem:[%s2 + $0xa0] sm:$0xff]
    %v96 = vld [vmem:[%s2 + $0xa8] sm:$0xff]
    %v97 = vld [vmem:[%s2 + $0xb0] sm:$0xff]
    %v98 = vld [vmem:[%s2 + $0xb8] sm:$0xff]
    %v99 = vld [vmem:[%s2 + $0xc0] sm:$0xff]
    %v100 = vld [vmem:[%s2 + $0xc8] sm:$0xff]
    %v101 = vld [vmem:[%s2 + $0xd0] sm:$0xff]
    %v102 = vld [vmem:[%s2 + $0xd8] sm:$0xff]
    %v103 = vld [vmem:[%s2 + $0xe0] sm:$0xff]
    %v104 = vld [vmem:[%s2 + $0xe8] sm:$0xff]
    %v105 = vld [vmem:[%s2 + $0xf0] sm:$0xff]
    %v106 = vld [vmem:[%s2 + $0xf8] sm:$0xff]
    %vm107 = vcmask 261120
    %v109 = vsel %vm107, %v74, 0
    %v112 = vsel %vm107, %v75, 0
    %v115 = vsel %vm107, %v76, 0
    %v118 = vsel %vm107, %v77, 0
    %v121 = vsel %vm107, %v78, 0
    %v124 = vsel %vm107, %v79, 0
    %v127 = vsel %vm107, %v80, 0
    %v130 = vsel %vm107, %v81, 0
    %v133 = vsel %vm107, %v82, 0
    %v136 = vsel %vm107, %v83, 0
    %v139 = vsel %vm107, %v84, 0
    %v142 = vsel %vm107, %v85, 0
    %v145 = vsel %vm107, %v86, 0
    %v148 = vsel %vm107, %v87, 0
    %v151 = vsel %vm107, %v88, 0
    %v154 = vsel %vm107, %v89, 0
    %v157 = vsel %vm107, %v90, 0
    %v160 = vsel %vm107, %v91, 0
    %v163 = vsel %vm107, %v92, 0
    %v166 = vsel %vm107, %v93, 0
    %v169 = vsel %vm107, %v94, 0
    %v172 = vsel %vm107, %v95, 0
    %v175 = vsel %vm107, %v96, 0
    %v178 = vsel %vm107, %v97, 0
    %v181 = vsel %vm107, %v98, 0
    %v184 = vsel %vm107, %v99, 0
    %v187 = vsel %vm107, %v100, 0
    %v190 = vsel %vm107, %v101, 0
    %v193 = vsel %vm107, %v102, 0
    %v196 = vsel %vm107, %v103, 0
    %v199 = vsel %vm107, %v104, 0
    %v202 = vsel %vm107, %v105, 0
    %v205 = vsel %vm107, %v106, 0
    %207 = vmatprep.subr.mxu0 0.0
    %208 = vmatpush1.xpose.msra.mxu0 %v112
    %209 = vmatprep.subr.mxu0 0.0
    %210 = vmatpush1.xpose.msra.mxu0 %v115
    %211 = vmatprep.subr.mxu0 0.0
    %212 = vmatpush1.xpose.msra.mxu0 %v118
    %213 = vmatprep.subr.mxu0 0.0
    %214 = vmatpush1.xpose.msra.mxu0 %v121
    %215 = vmatprep.subr.mxu0 0.0
    %216 = vmatpush1.xpose.msra.mxu0 %v124
    %217 = vmatprep.subr.mxu0 0.0
    %218 = vmatpush1.xpose.msra.mxu0 %v127
    %219 = vmatprep.subr.mxu0 0.0
    %220 = vmatpush1.xpose.msra.mxu0 %v130
    %221 = vmatprep.subr.mxu0 0.0
    %222 = vmatpush1.xpose.msra.mxu0 %v133
    %223 = vmatprep.subr.mxu0 0.0
    %224 = vmatpush1.xpose.msra.mxu0 %v136
    %225 = vmatprep.subr.mxu0 0.0
    %226 = vmatpush1.xpose.msra.mxu0 %v139
    %227 = vmatprep.subr.mxu0 0.0
    %228 = vmatpush1.xpose.msra.mxu0 %v142
    %229 = vmatprep.subr.mxu0 0.0
    %230 = vmatpush1.xpose.msra.mxu0 %v145
    %231 = vmatprep.subr.mxu0 0.0
    %232 = vmatpush1.xpose.msra.mxu0 %v148
    %233 = vmatprep.subr.mxu0 0.0
    %234 = vmatpush1.xpose.msra.mxu0 %v151
    %235 = vmatprep.subr.mxu0 0.0
    %236 = vmatpush1.xpose.msra.mxu0 %v154
    %237 = vmatprep.subr.mxu0 0.0
    %238 = vmatpush1.xpose.msra.mxu0 %v157
    %239 = vmatprep.subr.mxu0 0.0
    %240 = vmatpush1.xpose.msra.mxu0 %v160
    %241 = vmatprep.subr.mxu0 0.0
    %242 = vmatpush1.xpose.msra.mxu0 %v163
    %243 = vmatprep.subr.mxu0 0.0
    %244 = vmatpush1.xpose.msra.mxu0 %v166
    %245 = vmatprep.subr.mxu0 0.0
    %246 = vmatpush1.xpose.msra.mxu0 %v169
    %247 = vmatprep.subr.mxu0 0.0
    %248 = vmatpush1.xpose.msra.mxu0 %v172
    %249 = vmatprep.subr.mxu0 0.0
    %250 = vmatpush1.xpose.msra.mxu0 %v175
    %251 = vmatprep.subr.mxu0 0.0
    %252 = vmatpush1.xpose.msra.mxu0 %v178
    %253 = vmatprep.subr.mxu0 0.0
    %254 = vmatpush1.xpose.msra.mxu0 %v181
    %255 = vmatprep.subr.mxu0 0.0
    %256 = vmatpush1.xpose.msra.mxu0 %v184
    %257 = vmatprep.subr.mxu0 0.0
    %258 = vmatpush1.xpose.msra.mxu0 %v187
    %259 = vmatprep.subr.mxu0 0.0
    %260 = vmatpush1.xpose.msra.mxu0 %v190
    %261 = vmatprep.subr.mxu0 0.0
    %262 = vmatpush1.xpose.msra.mxu0 %v193
    %263 = vmatprep.subr.mxu0 0.0
    %264 = vmatpush1.xpose.msra.mxu0 %v196
    %265 = vmatprep.subr.mxu0 0.0
    %266 = vmatpush1.xpose.msra.mxu0 %v199
    %267 = vmatprep.subr.mxu0 0.0
    %268 = vmatpush1.xpose.msra.mxu0 %v202
    %269 = vmatprep.subr.mxu0 0.0
    %270 = vmatpush1.xpose.msra.mxu0 %v205
    %271 = vmatprep.mubr.f32.mxu0 0.0
    %272 = vmatmul.mubr.f32.gmra.mrb[0].mxu0 %v109
    %v273 = vpop.f32.mrb[0].mxu0
    %v274 = vadd.f32 0.0, %v273
    %v275 = vpop.f32.mrb[0].mxu0
    %v276 = vadd.f32 0.0, %v275
    %277 = vdwg.mxu0
    %v278 = vld [vmem:[%s65] sm:$0xff]
    %v279 = vsub.f32 %v274, %v278
    %v280 = vmul.f32 %v279, %v276
    %v281 = vld [vmem:[#allocation2] sm:$0xff]
    %v282 = vadd.f32 %v281, %v280
    %283 = vst [vmem:[#allocation2] sm:$0xff] %v282
    // Predicated region
    $region18: #{tpu_custom_call.1} parent=1 // pred_check
      %p284 = pneg %p69
    $region19: #{tpu_custom_call.1} parent=1 // pred_check_branch
      %286 = sbr.rel (%p284) target = $region21
    $region20: #{tpu_custom_call.1} parent=1 // pred_region
      %v287 = vld [vmem:[#allocation2] sm:$0xff]
      %288 = vadd.xlane.f32.xlu0 %v287
      %v289 = vpop.xlane.xlu0 %288
      %v290 = vrot.slane %v289, 4
      %v291 = vadd.f32 %v289, %v290
      %v292 = vrot.slane %v291, 2
      %v293 = vadd.f32 %v291, %v292
      %v294 = vrot.slane %v293, 1
      %v295 = vadd.f32 %v293, %v294
      %s296 = vtos %v295
      %v297 = vstv %s296
      %v298 = vadd.f32 %v297, 0.0
      %299 = vst [vmem:[#allocation3] sm:$0xff] %v298
    $region21: #{tpu_custom_call.1} parent=1 // pred_fallthru
      _
    // Predicated region
    $region22: #{tpu_custom_call.1} parent=1 // pred_check
      _
    $region23: #{tpu_custom_call.1} parent=1 // pred_check_branch
      %301 = sbr.rel (0) target = $region25
    $region24: #{tpu_custom_call.1} parent=1 // pred_region
      %s303 = ssub.s32 128, 128
      %304 = vsyncadd [#allocation4], %s303
      %s306 = sshll.u32 [#allocation3], 4
      %s307 = int_to_ptr.vmem [resolvable:$true] %s306
      %309 = dma.vmem_to_hbm [thread:$0]  %s307, 128, %s3, [#allocation4]
    $region25: #{tpu_custom_call.1} parent=1 // pred_fallthru
      _
    // Predicated region
    $region26: #{tpu_custom_call.1} parent=1 // pred_check
      _
    $region27: #{tpu_custom_call.1} parent=1 // pred_check_branch
      %311 = sbr.rel (0) target = $region29
    $region28: #{tpu_custom_call.1} parent=1 // pred_region
      %312 = dma.done [#allocation4], 128
    $region29: #{tpu_custom_call.1} parent=1 // pred_fallthru
      _
    %313 = vsyncpa [#allocation4], 1

// kernel: tpu_custom_call.1
$region0: #{tpu_custom_call.1}
  #allocation0 [shape = 'u32[]', space=smem, size = 0x4, offset = 0x4, fixed_abs, tag = 'smem constant byte address 0x4 - core index']
  #allocation1 [shape = 'u32[144,128]{1,0:T(1,128)}', space=vmem, size = 0x12000, scoped, tag = 'internal scratch']
  #allocation2 [shape = 'f32[8,128]{1,0:T(8,128)}', space=vmem, size = 0x1000, scoped, tag = 'scratch operand']
  %s0 = inlined_call_operand.vmem [shape: f32[8,32], index: 0, kind: input, shape index: {}]
  %s1 = inlined_call_operand.vmem [shape: f32[8,128], index: 1, kind: input, shape index: {}]
  %s2 = inlined_call_operand.vmem [shape: f32[256,32], index: 2, kind: input, shape index: {}]
  %s3 = inlined_call_operand.hbm [shape: f32[8,128], index: 3, kind: output, shape index: {}]
  %s4 = sld [smem:[#allocation0]]
  $region30: #{tpu_custom_call.1} parent=0
    _
  %s6 = ssub.s32 1, %s4
  %s7 = scalar_select 0, %s6, %s4
  $region1: #{tpu_custom_call.1} parent=0
    #allocation3 [shape = 'u8[4096]{0}', space=vmem, size = 0x1000, scoped, tag = 'output window, operand 0, single buffered']
    #allocation4 [shape = 's32[1]{0}', space=sflag, size = 0x4, scoped, tag = 'scoped memory for tpu_custom_call.1']
    %8 = vsyncpa [#allocation4], 0
    // Predicated region
    $region2: #{tpu_custom_call.1} parent=1 // pred_check
      _
    $region3: #{tpu_custom_call.1} parent=1 // pred_check_branch
      %10 = sbr.rel (0) target = $region5
    $region4: #{tpu_custom_call.1} parent=1 // pred_region
      %s11 = sadd.s32 0, 0
      %p12 = scmp.lt.s32.totalorder %s11, 0
      %s13 = scalar_select %p12, %s11, 0
      %p14 = scmp.lt.s32.totalorder %s13, 0
      %s15 = scalar_select %p14, %s13, 0
      %s16 = smul.addr %s15, 8
      %s17 = scalar_lea.vmem %s0, %s16
      %s18 = sadd.s32 0, 0
      %p19 = scmp.lt.s32.totalorder %s18, 0
      %s20 = scalar_select %p19, %s18, 0
    $region5: #{tpu_custom_call.1} parent=1 // pred_fallthru
      _
    // Predicated region
    $region6: #{tpu_custom_call.1} parent=1 // pred_check
      _
    $region7: #{tpu_custom_call.1} parent=1 // pred_check_branch
      %22 = sbr.rel (0) target = $region9
    $region8: #{tpu_custom_call.1} parent=1 // pred_region
      %s23 = sadd.s32 0, 0
      %p24 = scmp.lt.s32.totalorder %s23, 0
      %s25 = scalar_select %p24, %s23, 0
      %p26 = scmp.lt.s32.totalorder %s25, 0
      %s27 = scalar_select %p26, %s25, 0
      %s28 = smul.addr %s27, 8
      %s29 = scalar_lea.vmem %s1, %s28
      %s30 = sadd.s32 0, 0
      %p31 = scmp.lt.s32.totalorder %s30, 0
      %s32 = scalar_select %p31, %s30, 0
    $region9: #{tpu_custom_call.1} parent=1 // pred_fallthru
      _
    // Predicated region
    $region10: #{tpu_custom_call.1} parent=1 // pred_check
      _
    $region11: #{tpu_custom_call.1} parent=1 // pred_check_branch
      %34 = sbr.rel (0) target = $region13
    $region12: #{tpu_custom_call.1} parent=1 // pred_region
      _
    $region13: #{tpu_custom_call.1} parent=1 // pred_fallthru
      _
    %s35 = sadd.s32 0, 0
    %p36 = scmp.lt.s32.totalorder %s35, 0
    %s37 = scalar_select %p36, %s35, 0
    %p38 = scmp.lt.s32.totalorder %s37, 0
    %s39 = scalar_select %p38, %s37, 0
    %s40 = smul.addr %s39, 8
    %s41 = scalar_lea.vmem %s0, %s40
    %s42 = sadd.s32 0, 0
    %p43 = scmp.lt.s32.totalorder %s42, 0
    %s44 = scalar_select %p43, %s42, 0
    %p45 = scmp.lt.s32.totalorder %s44, 0
    %s46 = scalar_select %p45, %s44, 0
    %s47 = smul.addr %s46, 8
    %s48 = scalar_lea.vmem %s1, %s47
    %s49 = sadd.s32 0, 0
    %p50 = scmp.lt.s32.totalorder %s49, 0
    %s51 = scalar_select %p50, %s49, 0
    %p52 = scmp.lt.s32.totalorder %s51, 0
    %s53 = scalar_select %p52, %s51, 0
    %s54 = smul.addr %s53, 8
    %s55 = scalar_lea.vmem %s0, %s54
    %s56 = sadd.s32 0, 0
    %p57 = scmp.lt.s32.totalorder %s56, 0
    %s58 = scalar_select %p57, %s56, 0
    %s59 = sadd.s32 0, 0
    %p60 = scmp.lt.s32.totalorder %s59, 0
    %s61 = scalar_select %p60, %s59, 0
    %p62 = scmp.lt.s32.totalorder %s61, 0
    %s63 = scalar_select %p62, %s61, 0
    %s64 = smul.addr %s63, 8
    %s65 = scalar_lea.vmem %s1, %s64
    %s66 = sadd.s32 0, 0
    %p67 = scmp.lt.s32.totalorder %s66, 0
    %s68 = scalar_select %p67, %s66, 0
    %p69 = scmp.eq.s32.totalorder 0, 0
    // Predicated region
    $region14: #{tpu_custom_call.1} parent=1 // pred_check
      %p70 = pneg %p69
    $region15: #{tpu_custom_call.1} parent=1 // pred_check_branch
      %72 = sbr.rel (%p70) target = $region17
    $region16: #{tpu_custom_call.1} parent=1 // pred_region
      %73 = vst [vmem:[#allocation2] sm:$0xff] 0.0
    $region17: #{tpu_custom_call.1} parent=1 // pred_fallthru
      _
    %v74 = vld [vmem:[%s55] sm:$0xff]
    %v75 = vld [vmem:[%s2] sm:$0xff]
    %v76 = vld [vmem:[%s2 + $0x8] sm:$0xff]
    %v77 = vld [vmem:[%s2 + $0x10] sm:$0xff]
    %v78 = vld [vmem:[%s2 + $0x18] sm:$0xff]
    %v79 = vld [vmem:[%s2 + $0x20] sm:$0xff]
    %v80 = vld [vmem:[%s2 + $0x28] sm:$0xff]
    %v81 = vld [vmem:[%s2 + $0x30] sm:$0xff]
    %v82 = vld [vmem:[%s2 + $0x38] sm:$0xff]
    %v83 = vld [vmem:[%s2 + $0x40] sm:$0xff]
    %v84 = vld [vmem:[%s2 + $0x48] sm:$0xff]
    %v85 = vld [vmem:[%s2 + $0x50] sm:$0xff]
    %v86 = vld [vmem:[%s2 + $0x58] sm:$0xff]
    %v87 = vld [vmem:[%s2 + $0x60] sm:$0xff]
    %v88 = vld [vmem:[%s2 + $0x68] sm:$0xff]
    %v89 = vld [vmem:[%s2 + $0x70] sm:$0xff]
    %v90 = vld [vmem:[%s2 + $0x78] sm:$0xff]
    %v91 = vld [vmem:[%s2 + $0x80] sm:$0xff]
    %v92 = vld [vmem:[%s2 + $0x88] sm:$0xff]
    %v93 = vld [vmem:[%s2 + $0x90] sm:$0xff]
    %v94 = vld [vmem:[%s2 + $0x98] sm:$0xff]
    %v95 = vld [vmem:[%s2 + $0xa0] sm:$0xff]
    %v96 = vld [vmem:[%s2 + $0xa8] sm:$0xff]
    %v97 = vld [vmem:[%s2 + $0xb0] sm:$0xff]
    %v98 = vld [vmem:[%s2 + $0xb8] sm:$0xff]
    %v99 = vld [vmem:[%s2 + $0xc0] sm:$0xff]
    %v100 = vld [vmem:[%s2 + $0xc8] sm:$0xff]
    %v101 = vld [vmem:[%s2 + $0xd0] sm:$0xff]
    %v102 = vld [vmem:[%s2 + $0xd8] sm:$0xff]
    %v103 = vld [vmem:[%s2 + $0xe0] sm:$0xff]
    %v104 = vld [vmem:[%s2 + $0xe8] sm:$0xff]
    %v105 = vld [vmem:[%s2 + $0xf0] sm:$0xff]
    %v106 = vld [vmem:[%s2 + $0xf8] sm:$0xff]
    %vm107 = vcmask 261120
    %v109 = vsel %vm107, %v74, 0
    %v112 = vsel %vm107, %v75, 0
    %v115 = vsel %vm107, %v76, 0
    %v118 = vsel %vm107, %v77, 0
    %v121 = vsel %vm107, %v78, 0
    %v124 = vsel %vm107, %v79, 0
    %v127 = vsel %vm107, %v80, 0
    %v130 = vsel %vm107, %v81, 0
    %v133 = vsel %vm107, %v82, 0
    %v136 = vsel %vm107, %v83, 0
    %v139 = vsel %vm107, %v84, 0
    %v142 = vsel %vm107, %v85, 0
    %v145 = vsel %vm107, %v86, 0
    %v148 = vsel %vm107, %v87, 0
    %v151 = vsel %vm107, %v88, 0
    %v154 = vsel %vm107, %v89, 0
    %v157 = vsel %vm107, %v90, 0
    %v160 = vsel %vm107, %v91, 0
    %v163 = vsel %vm107, %v92, 0
    %v166 = vsel %vm107, %v93, 0
    %v169 = vsel %vm107, %v94, 0
    %v172 = vsel %vm107, %v95, 0
    %v175 = vsel %vm107, %v96, 0
    %v178 = vsel %vm107, %v97, 0
    %v181 = vsel %vm107, %v98, 0
    %v184 = vsel %vm107, %v99, 0
    %v187 = vsel %vm107, %v100, 0
    %v190 = vsel %vm107, %v101, 0
    %v193 = vsel %vm107, %v102, 0
    %v196 = vsel %vm107, %v103, 0
    %v199 = vsel %vm107, %v104, 0
    %v202 = vsel %vm107, %v105, 0
    %v205 = vsel %vm107, %v106, 0
    %207 = vmatprep.subr.mxu0 0.0
    %208 = vmatpush1.xpose.msra.mxu0 %v112
    %209 = vmatprep.subr.mxu0 0.0
    %210 = vmatpush1.xpose.msra.mxu0 %v115
    %211 = vmatprep.subr.mxu0 0.0
    %212 = vmatpush1.xpose.msra.mxu0 %v118
    %213 = vmatprep.subr.mxu0 0.0
    %214 = vmatpush1.xpose.msra.mxu0 %v121
    %215 = vmatprep.subr.mxu0 0.0
    %216 = vmatpush1.xpose.msra.mxu0 %v124
    %217 = vmatprep.subr.mxu0 0.0
    %218 = vmatpush1.xpose.msra.mxu0 %v127
    %219 = vmatprep.subr.mxu0 0.0
    %220 = vmatpush1.xpose.msra.mxu0 %v130
    %221 = vmatprep.subr.mxu0 0.0
    %222 = vmatpush1.xpose.msra.mxu0 %v133
    %223 = vmatprep.subr.mxu0 0.0
    %224 = vmatpush1.xpose.msra.mxu0 %v136
    %225 = vmatprep.subr.mxu0 0.0
    %226 = vmatpush1.xpose.msra.mxu0 %v139
    %227 = vmatprep.subr.mxu0 0.0
    %228 = vmatpush1.xpose.msra.mxu0 %v142
    %229 = vmatprep.subr.mxu0 0.0
    %230 = vmatpush1.xpose.msra.mxu0 %v145
    %231 = vmatprep.subr.mxu0 0.0
    %232 = vmatpush1.xpose.msra.mxu0 %v148
    %233 = vmatprep.subr.mxu0 0.0
    %234 = vmatpush1.xpose.msra.mxu0 %v151
    %235 = vmatprep.subr.mxu0 0.0
    %236 = vmatpush1.xpose.msra.mxu0 %v154
    %237 = vmatprep.subr.mxu0 0.0
    %238 = vmatpush1.xpose.msra.mxu0 %v157
    %239 = vmatprep.subr.mxu0 0.0
    %240 = vmatpush1.xpose.msra.mxu0 %v160
    %241 = vmatprep.subr.mxu0 0.0
    %242 = vmatpush1.xpose.msra.mxu0 %v163
    %243 = vmatprep.subr.mxu0 0.0
    %244 = vmatpush1.xpose.msra.mxu0 %v166
    %245 = vmatprep.subr.mxu0 0.0
    %246 = vmatpush1.xpose.msra.mxu0 %v169
    %247 = vmatprep.subr.mxu0 0.0
    %248 = vmatpush1.xpose.msra.mxu0 %v172
    %249 = vmatprep.subr.mxu0 0.0
    %250 = vmatpush1.xpose.msra.mxu0 %v175
    %251 = vmatprep.subr.mxu0 0.0
    %252 = vmatpush1.xpose.msra.mxu0 %v178
    %253 = vmatprep.subr.mxu0 0.0
    %254 = vmatpush1.xpose.msra.mxu0 %v181
    %255 = vmatprep.subr.mxu0 0.0
    %256 = vmatpush1.xpose.msra.mxu0 %v184
    %257 = vmatprep.subr.mxu0 0.0
    %258 = vmatpush1.xpose.msra.mxu0 %v187
    %259 = vmatprep.subr.mxu0 0.0
    %260 = vmatpush1.xpose.msra.mxu0 %v190
    %261 = vmatprep.subr.mxu0 0.0
    %262 = vmatpush1.xpose.msra.mxu0 %v193
    %263 = vmatprep.subr.mxu0 0.0
    %264 = vmatpush1.xpose.msra.mxu0 %v196
    %265 = vmatprep.subr.mxu0 0.0
    %266 = vmatpush1.xpose.msra.mxu0 %v199
    %267 = vmatprep.subr.mxu0 0.0
    %268 = vmatpush1.xpose.msra.mxu0 %v202
    %269 = vmatprep.subr.mxu0 0.0
    %270 = vmatpush1.xpose.msra.mxu0 %v205
    %271 = vmatprep.mubr.f32.mxu0 0.0
    %272 = vmatmul.mubr.f32.gmra.mrb[0].mxu0 %v109
    %v273 = vpop.f32.mrb[0].mxu0
    %v274 = vadd.f32 0.0, %v273
    %v275 = vpop.f32.mrb[0].mxu0
    %v276 = vadd.f32 0.0, %v275
    %277 = vdwg.mxu0
    %v278 = vld [vmem:[%s65] sm:$0xff]
    %v279 = vsub.f32 %v274, %v278
    %v280 = vmul.f32 %v279, %v276
    %v281 = vld [vmem:[#allocation2] sm:$0xff]
    %v282 = vadd.f32 %v281, %v280
    %283 = vst [vmem:[#allocation2] sm:$0xff] %v282
    // Predicated region
    $region18: #{tpu_custom_call.1} parent=1 // pred_check
      %p284 = pneg %p69
    $region19: #{tpu_custom_call.1} parent=1 // pred_check_branch
      %286 = sbr.rel (%p284) target = $region21
    $region20: #{tpu_custom_call.1} parent=1 // pred_region
      %v287 = vld [vmem:[#allocation2] sm:$0xff]
      %288 = vadd.xlane.f32.xlu0 %v287
      %v289 = vpop.xlane.xlu0 %288
      %v290 = vrot.slane %v289, 4
      %v291 = vadd.f32 %v289, %v290
      %v292 = vrot.slane %v291, 2
      %v293 = vadd.f32 %v291, %v292
      %v294 = vrot.slane %v293, 1
      %v295 = vadd.f32 %v293, %v294
      %s296 = vtos %v295
      %v297 = vstv %s296
      %v298 = vadd.f32 %v297, 0.0
      %299 = vst [vmem:[#allocation3] sm:$0xff] %v298
    $region21: #{tpu_custom_call.1} parent=1 // pred_fallthru
      _
    // Predicated region
    $region22: #{tpu_custom_call.1} parent=1 // pred_check
      _
    $region23: #{tpu_custom_call.1} parent=1 // pred_check_branch
      %301 = sbr.rel (0) target = $region25
    $region24: #{tpu_custom_call.1} parent=1 // pred_region
      %s303 = ssub.s32 128, 128
      %304 = vsyncadd [#allocation4], %s303
      %s306 = sshll.u32 [#allocation3], 4
      %s307 = int_to_ptr.vmem [resolvable:$true] %s306
      %309 = dma.vmem_to_hbm [thread:$0]  %s307, 128, %s3, [#allocation4]
    $region25: #{tpu_custom_call.1} parent=1 // pred_fallthru
      _
    // Predicated region
    $region26: #{tpu_custom_call.1} parent=1 // pred_check
      _
    $region27: #{tpu_custom_call.1} parent=1 // pred_check_branch
      %311 = sbr.rel (0) target = $region29
    $region28: #{tpu_custom_call.1} parent=1 // pred_region
      %312 = dma.done [#allocation4], 128
    $region29: #{tpu_custom_call.1} parent=1 // pred_fallthru
      _
    %313 = vsyncpa [#allocation4], 1

</llo_original>
